<compile_context>
chip_gen: v7x
topology: tpu7x:2x2x1
jax: 0.10.0
libtpu: 0.0.40
codegen_flags: <defaults>
</compile_context>

<pallas_src>
import math
from functools import partial

import numpy as np
import jax
import jax.numpy as jnp
from jax import lax
from jax.experimental import pallas as pl
from jax.experimental.pallas import tpu as pltpu


# ---------------------------------------------------------------------------
# Kernel
# ---------------------------------------------------------------------------
def _scale_kernel(scale_ref, x_ref, o_ref, *, d, cols_only):
    """o = x * scale, scale = 1/img_w on even feature lanes, 1/img_h on odd.

    scale_ref : SMEM (2,)   f32  -> [1/img_w, 1/img_h]
    x_ref     : VMEM (bm,C) f32  -> lane-dense flattened condition block
    o_ref     : VMEM (bm,C) f32
    """
    shp = x_ref.shape                                   # (bm, C), static
    col = lax.broadcasted_iota(jnp.int32, shp, 1)
    if cols_only:
        # C % d == 0 -> feature index depends only on the lane index.
        feat = col % d
    else:
        row = lax.broadcasted_iota(jnp.int32, shp, 0) + pl.program_id(0) * shp[0]
        feat = (row * shp[1] + col) % d
    inv = jnp.where(feat % 2 == 0, scale_ref[0], scale_ref[1])
    o_ref[...] = x_ref[...] * inv


# ---------------------------------------------------------------------------
# Wrapper
# ---------------------------------------------------------------------------
_LANE_CANDIDATES = (4096, 2048, 1024, 512, 256, 128)
_TARGET_BLOCK_BYTES = 2 * 1024 * 1024    # ~2 MiB input per grid step
_SINGLE_BLOCK_BYTES = 256 * 1024         # below this a single block is cheaper


@jax.jit
def _normalize_impl(cond, scales):
    """cond: (B, T, D) f32; scales: (2,) f32 = [1/img_w, 1/img_h]."""
    B, T, D = cond.shape
    total = B * T * D

    # Lane-dense (R, C) view: C a multiple of 128, preferably dividing `total`
    # exactly (no pad copy); otherwise a small zero-pad of the flat buffer.
    C = next((c for c in _LANE_CANDIDATES if total % c == 0), 512)
    pad = (-total) % C
    flat = cond.reshape(total)
    if pad:
        flat = jnp.pad(flat, (0, pad))
    R = (total + pad) // C
    x2d = flat.reshape(R, C)

    row_bytes = C * 4
    if R * row_bytes <= _SINGLE_BLOCK_BYTES or R < 16:
        bm = R                                  # single block == full array dims
    else:
        # >=2 grid steps (pipelining + v7x megacore), ~2 MiB/step, rows mult. of 8.
        bm = min((_TARGET_BLOCK_BYTES // row_bytes) // 8 * 8,
                 (R // 2) // 8 * 8)
        bm = max(8, bm)
    grid = (pl.cdiv(R, bm),)

    kernel = partial(_scale_kernel, d=D, cols_only=(C % D == 0))

    out2d = pl.pallas_call(
        kernel,
        out_shape=jax.ShapeDtypeStruct((R, C), jnp.float32),
        grid=grid,
        in_specs=[
            pl.BlockSpec(memory_space=pltpu.MemorySpace.SMEM),   # [1/w, 1/h] scalars
            pl.BlockSpec((bm, C), lambda i: (i, 0)),             # batch-row tile
        ],
        out_specs=pl.BlockSpec((bm, C), lambda i: (i, 0)),
        input_output_aliases={1: 0},             # un-normalized buffer never reused
        compiler_params=pltpu.CompilerParams(
            dimension_semantics=("parallel",),   # v7x: both TCs stream tiles
        ),
    )(scales, x2d)

    out_flat = out2d.reshape(R * C)
    if pad:
        out_flat = out_flat[:total]
    return out_flat.reshape(B, T, D)


def normalize_conditions(cond: jax.Array, img_w: float, img_h: float) -> jax.Array:
    """cond: (B, T, D). Returns cond with x-coords / img_w and y-coords / img_h."""
    scales = jnp.asarray([1.0 / float(img_w), 1.0 / float(img_h)], dtype=jnp.float32)
    return _normalize_impl(cond.astype(jnp.float32), scales)


# ---------------------------------------------------------------------------
# Module port
# ---------------------------------------------------------------------------
class BaseModelPallas:
    """JAX/Pallas port of BaseModel.generate (the condition-encoding pipeline)."""

    def __init__(self, config):
        self.config = config

    def forward(self, x):
        # TODO(synk): abstract in the reference module (raises NotImplementedError);
        # subclasses define the real track-prediction network. Identity here.
        return x

    def generate(self, conditions, img_w, img_h, **kwargs):
        interval = self.config["interval"]

        padded = []
        for c in conditions:
            tmp_c = np.asarray(c, dtype=np.float32)              # (L, D)
            if tmp_c.shape[0] > interval:
                # Reference torch code would raise on a negative repeat count; be explicit.
                raise ValueError(
                    f"condition length {tmp_c.shape[0]} exceeds interval {interval}")
            if tmp_c.shape[0] != interval:
                tmp_c = np.pad(tmp_c,
                               ((0, interval - tmp_c.shape[0]), (0, 0)),
                               mode="edge")                      # repeat last row
            padded.append(tmp_c)
        cond_encodeds = jnp.asarray(np.stack(padded, axis=0))    # (B, T, D), one H2D

        normalized = normalize_conditions(cond_encodeds, float(img_w), float(img_h))
        track_pred = self.forward(normalized)
        return np.asarray(jax.block_until_ready(track_pred))


# ---------------------------------------------------------------------------
# Self-test
# ---------------------------------------------------------------------------
def _numpy_ref(arr, img_w, img_h):
    ref = np.array(arr, dtype=np.float32, copy=True)
    ref[:, :, 0::2] = ref[:, :, 0::2] / img_w
    ref[:, :, 1::2] = ref[:, :, 1::2] / img_h
    return ref


if __name__ == "__main__":
    img_w, img_h = 640.0, 480.0
    keys = jax.random.split(jax.random.PRNGKey(0), 4)

    # --- 1) End-to-end through generate(): B=2, interval=8, D=4, ragged input ---
    B, interval, D = 2, 8, 4
    cond0 = np.asarray(jax.random.uniform(keys[0], (5, D), minval=0.0, maxval=640.0))
    cond1 = np.asarray(jax.random.uniform(keys[1], (interval, D), minval=0.0, maxval=640.0))
    conditions = [cond0, cond1]

    model = BaseModelPallas({"interval": interval})
    out = model.generate(conditions, img_w, img_h)

    ref_rows = []
    for c in conditions:
        t = np.asarray(c, dtype=np.float32)
        if len(t) != interval:
            t = np.concatenate([t, np.repeat(t[-1:], interval - len(t), axis=0)], axis=0)
        ref_rows.append(t[None])
    ref = _numpy_ref(np.concatenate(ref_rows, axis=0), img_w, img_h)
    assert out.shape == (B, interval, D)
    np.testing.assert_allclose(out, ref, rtol=1e-5, atol=1e-6)

    # --- 2) Tiled multi-block path (grid >= 2, full lane-dense blocks) ---
    big = jax.random.uniform(keys[2], (2048, 16, 4), minval=0.0, maxval=640.0,
                             dtype=jnp.float32)
    big_np = np.asarray(big)
    got_big = np.asarray(jax.block_until_ready(normalize_conditions(big, img_w, img_h)))
    np.testing.assert_allclose(got_big, _numpy_ref(big_np, img_w, img_h),
                               rtol=1e-5, atol=1e-6)

    # --- 3) Odd feature dim (D=3) + flat-pad path (C % D != 0 -> row-aware mask) ---
    odd = jax.random.uniform(keys[3], (130, 10, 3), minval=0.0, maxval=640.0,
                             dtype=jnp.float32)
    odd_np = np.asarray(odd)
    got_odd = np.asarray(jax.block_until_ready(normalize_conditions(odd, img_w, img_h)))
    np.testing.assert_allclose(got_odd, _numpy_ref(odd_np, img_w, img_h),
                               rtol=1e-5, atol=1e-6)

    print("KERNEL_OK")
</pallas_src>

<mosaic_0001>
module attributes {stable_mosaic.version = 11 : i64} {
  func.func @_scale_kernel(%arg0: i32, %arg1: memref<2xf32, #tpu.memory_space<smem>>, %arg2: memref<1x512xf32, #tpu.memory_space<vmem>>, %arg3: memref<1x512xf32, #tpu.memory_space<vmem>>) attributes {dimension_semantics = [#tpu.dimension_semantics<parallel>], iteration_bounds = array<i64: 1>, scalar_prefetch = 0 : i64, scratch_operands = 0 : i64, tpu.core_type = #tpu.core_type<tc>, window_params = [{transform_indices = @transform_0, window_bounds = array<i64: 2>}, {transform_indices = @transform_1, window_bounds = array<i64: 1, 512>}, {transform_indices = @transform_2, window_bounds = array<i64: 1, 512>}]} {
    %0 = tpu.iota {dimensions = array<i32: 1>} : vector<1x512xi32>
    %c4_i32 = arith.constant 4 : i32
    %c0_i32 = arith.constant 0 : i32
    %1 = arith.cmpi eq, %c4_i32, %c0_i32 : i32
    %c1_i32 = arith.constant 1 : i32
    %2 = arith.select %1, %c1_i32, %c4_i32 : i32
    %3 = vector.broadcast %2 : i32 to vector<1x512xi32>
    %4 = arith.remsi %0, %3 : vector<1x512xi32>
    %c0_i32_0 = arith.constant 0 : i32
    %5 = vector.broadcast %c0_i32_0 : i32 to vector<1x512xi32>
    %6 = arith.cmpi ne, %4, %5 : vector<1x512xi32>
    %c0_i32_1 = arith.constant 0 : i32
    %7 = vector.broadcast %c0_i32_1 : i32 to vector<1x512xi32>
    %8 = arith.cmpi slt, %4, %7 : vector<1x512xi32>
    %c0_i32_2 = arith.constant 0 : i32
    %9 = arith.cmpi slt, %2, %c0_i32_2 : i32
    %10 = vector.broadcast %9 : i1 to vector<1x512xi1>
    %11 = vector.broadcast %10 : vector<1x512xi1> to vector<1x512xi1>
    %12 = arith.xori %8, %11 : vector<1x512xi1>
    %13 = arith.andi %12, %6 : vector<1x512xi1>
    %14 = vector.broadcast %2 : i32 to vector<1x512xi32>
    %15 = arith.addi %4, %14 : vector<1x512xi32>
    %16 = arith.select %13, %15, %4 : vector<1x512xi1>, vector<1x512xi32>
    %c2_i32 = arith.constant 2 : i32
    %c0_i32_3 = arith.constant 0 : i32
    %17 = arith.cmpi eq, %c2_i32, %c0_i32_3 : i32
    %c1_i32_4 = arith.constant 1 : i32
    %18 = arith.select %17, %c1_i32_4, %c2_i32 : i32
    %19 = vector.broadcast %18 : i32 to vector<1x512xi32>
    %20 = arith.remsi %16, %19 : vector<1x512xi32>
    %c0_i32_5 = arith.constant 0 : i32
    %21 = vector.broadcast %c0_i32_5 : i32 to vector<1x512xi32>
    %22 = arith.cmpi ne, %20, %21 : vector<1x512xi32>
    %c0_i32_6 = arith.constant 0 : i32
    %23 = vector.broadcast %c0_i32_6 : i32 to vector<1x512xi32>
    %24 = arith.cmpi slt, %20, %23 : vector<1x512xi32>
    %c0_i32_7 = arith.constant 0 : i32
    %25 = arith.cmpi slt, %18, %c0_i32_7 : i32
    %26 = vector.broadcast %25 : i1 to vector<1x512xi1>
    %27 = vector.broadcast %26 : vector<1x512xi1> to vector<1x512xi1>
    %28 = arith.xori %24, %27 : vector<1x512xi1>
    %29 = arith.andi %28, %22 : vector<1x512xi1>
    %30 = vector.broadcast %18 : i32 to vector<1x512xi32>
    %31 = arith.addi %20, %30 : vector<1x512xi32>
    %32 = arith.select %29, %31, %20 : vector<1x512xi1>, vector<1x512xi32>
    %c0_i32_8 = arith.constant 0 : i32
    %33 = vector.broadcast %c0_i32_8 : i32 to vector<1x512xi32>
    %34 = arith.cmpi eq, %32, %33 : vector<1x512xi32>
    %c0 = arith.constant 0 : index
    %35 = memref.load %arg1[%c0] : memref<2xf32, #tpu.memory_space<smem>>
    %c1 = arith.constant 1 : index
    %36 = memref.load %arg1[%c1] : memref<2xf32, #tpu.memory_space<smem>>
    %37 = vector.broadcast %35 : f32 to vector<1x512xf32>
    %38 = vector.broadcast %36 : f32 to vector<1x512xf32>
    %39 = arith.select %34, %37, %38 : vector<1x512xi1>, vector<1x512xf32>
    %c0_9 = arith.constant 0 : index
    %c0_10 = arith.constant 0 : index
    %40 = vector.load %arg2[%c0_9, %c0_10] : memref<1x512xf32, #tpu.memory_space<vmem>>, vector<1x512xf32>
    %41 = arith.mulf %40, %39 : vector<1x512xf32>
    %c0_11 = arith.constant 0 : index
    %c0_12 = arith.constant 0 : index
    %42 = vector.load %arg3[%c0_11, %c0_12] : memref<1x512xf32, #tpu.memory_space<vmem>>, vector<1x512xf32>
    tpu.vector_store %arg3[%c0_11, %c0_12], %41 {strides = array<i32>} : memref<1x512xf32, #tpu.memory_space<vmem>>, vector<1x512xf32>,
    return
  }
  func.func @transform_0(%arg0: i32) -> i32 {
    %c0_i32 = arith.constant 0 : i32
    %c0_i32_0 = arith.constant 0 : i32
    return %c0_i32 : i32
  }
  func.func @transform_1(%arg0: i32) -> (i32, i32) {
    %c0_i32 = arith.constant 0 : i32
    %c0_i32_0 = arith.constant 0 : i32
    return %arg0, %c0_i32 : i32, i32
  }
  func.func @transform_2(%arg0: i32) -> (i32, i32) {
    %c0_i32 = arith.constant 0 : i32
    %c0_i32_0 = arith.constant 0 : i32
    return %arg0, %c0_i32 : i32, i32
  }
}

</mosaic_0001>

<llo_original>
// kernel: _normalize_impl.1
$region0: #{_normalize_impl.1}
  #allocation0 [shape = 'u32[]', space=smem, size = 0x4, offset = 0x4, fixed_abs, tag = 'smem constant byte address 0x4 - core index']
  #allocation1 [shape = 'u32[144,128]{1,0:T(1,128)}', space=vmem, size = 0x12000, scoped, tag = 'internal scratch']
  %s0 = inlined_call_operand.vmem [shape: f32[2], index: 0, kind: input, shape index: {}]
  %s1 = inlined_call_operand.vmem [shape: f32[1,512], index: 1, kind: input, shape index: {}, may-alias: {1,2}]
  %s2 = inlined_call_operand.vmem [shape: f32[1,512], index: 2, kind: output, shape index: {}, may-alias: {1,2}]
  %s3 = sld [smem:[#allocation0]]
  $region22: #{_normalize_impl.1} parent=0
    _
  %s5 = ssub.s32 1, %s3
  %s6 = scalar_select 0, %s5, %s3
  $region1: #{_normalize_impl.1} parent=0
    #allocation2 [shape = 'u8[512]{0}', space=smem, size = 0x200, scoped, tag = 'input window, operand 0, single buffered']
    #allocation3 [shape = 's32[1]{0}', space=sflag, size = 0x4, scoped, tag = 'scoped memory for _normalize_impl.1']
    %7 = vsyncpa [#allocation3], 0
    // Predicated region
    $region2: #{_normalize_impl.1} parent=1 // pred_check
      _
    $region3: #{_normalize_impl.1} parent=1 // pred_check_branch
      %9 = sbr.rel (0) target = $region5
    $region4: #{_normalize_impl.1} parent=1 // pred_region
      %s11 = ssub.s32 16, 16
      %12 = vsyncadd [#allocation3], %s11
      %s14 = sshll.u32 %s0, 4
      %s15 = int_to_ptr.vmem [resolvable:$true] %s14
      %17 = dma.vmem_to_smem %s15, 16, [#allocation2], [#allocation3]
    $region5: #{_normalize_impl.1} parent=1 // pred_fallthru
      _
    // Predicated region
    $region6: #{_normalize_impl.1} parent=1 // pred_check
      _
    $region7: #{_normalize_impl.1} parent=1 // pred_check_branch
      %19 = sbr.rel (0) target = $region9
    $region8: #{_normalize_impl.1} parent=1 // pred_region
      _
    $region9: #{_normalize_impl.1} parent=1 // pred_fallthru
      _
    // Predicated region
    $region10: #{_normalize_impl.1} parent=1 // pred_check
      _
    $region11: #{_normalize_impl.1} parent=1 // pred_check_branch
      %21 = sbr.rel (0) target = $region13
    $region12: #{_normalize_impl.1} parent=1 // pred_region
      %22 = dma.done [#allocation3], 16
    $region13: #{_normalize_impl.1} parent=1 // pred_fallthru
      _
    %23 = sfence
    %v24 = vlaneseq
    %v25 = vand.u32 %v24, 127
    %v26 = vadd.s32 %v25, 128
    %v27 = vadd.s32 %v25, 256
    %v28 = vadd.s32 %v25, 384
    %vm29 = vcmp.lt.s32.totalorder %v25, 0
    %v30 = vsub.s32 0, %v25
    %v31 = vsel %vm29, %v30, %v25
    %v32 = vshrl.u32 %v31, 2
    %v33 = vand.u32 %v31, 3
    %v34 = vsub.s32 0, %v33
    %v35 = vsel %vm29, %v34, %v33
    %vm36 = vcmp.lt.s32.totalorder %v26, 0
    %v37 = vsub.s32 0, %v26
    %v38 = vsel %vm36, %v37, %v26
    %v39 = vshrl.u32 %v38, 2
    %v40 = vand.u32 %v38, 3
    %v41 = vsub.s32 0, %v40
    %v42 = vsel %vm36, %v41, %v40
    %vm43 = vcmp.lt.s32.totalorder %v27, 0
    %v44 = vsub.s32 0, %v27
    %v45 = vsel %vm43, %v44, %v27
    %v46 = vshrl.u32 %v45, 2
    %v47 = vand.u32 %v45, 3
    %v48 = vsub.s32 0, %v47
    %v49 = vsel %vm43, %v48, %v47
    %vm50 = vcmp.lt.s32.totalorder %v28, 0
    %v51 = vsub.s32 0, %v28
    %v52 = vsel %vm50, %v51, %v28
    %v53 = vshrl.u32 %v52, 2
    %v54 = vand.u32 %v52, 3
    %v55 = vsub.s32 0, %v54
    %v56 = vsel %vm50, %v55, %v54
    %vm57 = vcmp.ne.s32.totalorder %v35, 0
    %vm58 = vcmp.ne.s32.totalorder %v42, 0
    %vm59 = vcmp.ne.s32.totalorder %v49, 0
    %vm60 = vcmp.ne.s32.totalorder %v56, 0
    %vm61 = vcmp.lt.s32.totalorder %v35, 0
    %vm62 = vcmp.lt.s32.totalorder %v42, 0
    %vm63 = vcmp.lt.s32.totalorder %v49, 0
    %vm64 = vcmp.lt.s32.totalorder %v56, 0
    %vm65 = vmand %vm61, %vm57
    %vm66 = vmand %vm62, %vm58
    %vm67 = vmand %vm63, %vm59
    %vm68 = vmand %vm64, %vm60
    %v69 = vadd.s32 %v35, 4
    %v70 = vadd.s32 %v42, 4
    %v71 = vadd.s32 %v49, 4
    %v72 = vadd.s32 %v56, 4
    %v73 = vsel %vm65, %v69, %v35
    %v74 = vsel %vm66, %v70, %v42
    %v75 = vsel %vm67, %v71, %v49
    %v76 = vsel %vm68, %v72, %v56
    %vm77 = vcmp.lt.s32.totalorder %v73, 0
    %v78 = vsub.s32 0, %v73
    %v79 = vsel %vm77, %v78, %v73
    %v80 = vshrl.u32 %v79, 1
    %v81 = vand.u32 %v79, 1
    %v82 = vsub.s32 0, %v81
    %v83 = vsel %vm77, %v82, %v81
    %vm84 = vcmp.lt.s32.totalorder %v74, 0
    %v85 = vsub.s32 0, %v74
    %v86 = vsel %vm84, %v85, %v74
    %v87 = vshrl.u32 %v86, 1
    %v88 = vand.u32 %v86, 1
    %v89 = vsub.s32 0, %v88
    %v90 = vsel %vm84, %v89, %v88
    %vm91 = vcmp.lt.s32.totalorder %v75, 0
    %v92 = vsub.s32 0, %v75
    %v93 = vsel %vm91, %v92, %v75
    %v94 = vshrl.u32 %v93, 1
    %v95 = vand.u32 %v93, 1
    %v96 = vsub.s32 0, %v95
    %v97 = vsel %vm91, %v96, %v95
    %vm98 = vcmp.lt.s32.totalorder %v76, 0
    %v99 = vsub.s32 0, %v76
    %v100 = vsel %vm98, %v99, %v76
    %v101 = vshrl.u32 %v100, 1
    %v102 = vand.u32 %v100, 1
    %v103 = vsub.s32 0, %v102
    %v104 = vsel %vm98, %v103, %v102
    %vm105 = vcmp.ne.s32.totalorder %v83, 0
    %vm106 = vcmp.ne.s32.totalorder %v90, 0
    %vm107 = vcmp.ne.s32.totalorder %v97, 0
    %vm108 = vcmp.ne.s32.totalorder %v104, 0
    %vm109 = vcmp.lt.s32.totalorder %v83, 0
    %vm110 = vcmp.lt.s32.totalorder %v90, 0
    %vm111 = vcmp.lt.s32.totalorder %v97, 0
    %vm112 = vcmp.lt.s32.totalorder %v104, 0
    %vm113 = vmand %vm109, %vm105
    %vm114 = vmand %vm110, %vm106
    %vm115 = vmand %vm111, %vm107
    %vm116 = vmand %vm112, %vm108
    %v117 = vadd.s32 %v83, 2
    %v118 = vadd.s32 %v90, 2
    %v119 = vadd.s32 %v97, 2
    %v120 = vadd.s32 %v104, 2
    %v121 = vsel %vm113, %v117, %v83
    %v122 = vsel %vm114, %v118, %v90
    %v123 = vsel %vm115, %v119, %v97
    %v124 = vsel %vm116, %v120, %v104
    %vm125 = vcmp.eq.s32.totalorder %v121, 0
    %vm126 = vcmp.eq.s32.totalorder %v122, 0
    %vm127 = vcmp.eq.s32.totalorder %v123, 0
    %vm128 = vcmp.eq.s32.totalorder %v124, 0
    %s129 = sld [smem:[#allocation2]]
    %s130 = sld [smem:[#allocation2 + $0x1]]
    %v131 = vstv %s129
    %v132 = vstv %s130
    %v133 = vsel %vm125, %v131, %v132
    %v134 = vsel %vm126, %v131, %v132
    %v135 = vsel %vm127, %v131, %v132
    %v136 = vsel %vm128, %v131, %v132
    %v137 = vld [vmem:[%s1] sm:$0xf]
    %v142 = vcombine.low %v133, %v134
    %v143 = vcombine.low %v135, %v136
    %v145 = vunpack.c.l.s4 1966171168
    %v146 = vunpack.c.0.s8 %v145
    %v147 = vlaneseq
    %v148 = vshrl.u32 %v147, 7
    %v149 = vsub.s32 %v146, %v148
    %v150 = vrot.slane %v142, %v149
    %v152 = vunpack.c.l.s4 1966171168
    %v153 = vunpack.c.0.s8 %v152
    %v154 = vlaneseq
    %v155 = vshrl.u32 %v154, 7
    %v156 = vsub.s32 %v153, %v155
    %v157 = vrot.slane %v143, %v156
    %v158 = vcombine.low %v150, %v157
    %v160 = vunpack.c.l.s4 1966171168
    %v161 = vunpack.c.0.s8 %v160
    %v162 = vlaneseq
    %v163 = vshrl.u32 %v162, 7
    %v164 = vsub.s32 %v161, %v163
    %v165 = vrot.slane %v158, %v164
    %v167 = vmul.f32 %v137, %v165
    %v168 = vlaneseq
    %vm169 = vcmp.ge.s32.totalorder %v168, 0
    %vm170 = vcmp.lt.s32.totalorder %v168, 512
    %vm171 = vmand %vm169, %vm170
    %172 = vst.msk [vmem:[%s2] sm:$0xf] %vm171, %v167
    // Predicated region
    $region14: #{_normalize_impl.1} parent=1 // pred_check
      _
    $region15: #{_normalize_impl.1} parent=1 // pred_check_branch
      %174 = sbr.rel (0) target = $region17
    $region16: #{_normalize_impl.1} parent=1 // pred_region
      _
    $region17: #{_normalize_impl.1} parent=1 // pred_fallthru
      _
    // Predicated region
    $region18: #{_normalize_impl.1} parent=1 // pred_check
      _
    $region19: #{_normalize_impl.1} parent=1 // pred_check_branch
      %176 = sbr.rel (0) target = $region21
    $region20: #{_normalize_impl.1} parent=1 // pred_region
      _
    $region21: #{_normalize_impl.1} parent=1 // pred_fallthru
      _
    %177 = vsyncpa [#allocation3], 1

</llo_original>
